<compile_context>
chip_gen: v6e
topology: v6e:2x2x1
jax: 0.10.0
libtpu: 0.0.40
codegen_flags: <defaults>
</compile_context>

<pallas_src>
import jax
import jax.numpy as jnp
import numpy as np
from jax import lax
from jax.experimental import pallas as pl
from jax.experimental.pallas import tpu as pltpu


# ----------------------------------------------------------------------------
# Pass 1: tiny input statistics (accumulated across the M grid axis)
#   xT_ref   : (Cin, TM)    column tile of channel-major flattened input
#   gram_ref : (Cin, Cin)   running X @ X^T   (for BN sum of squares of y)
#   csum_ref : (Cin, 1)     running column sum of X (for BN mean of y)
# ----------------------------------------------------------------------------
def _stats_kernel(xT_ref, gram_ref, csum_ref):
    @pl.when(pl.program_id(0) == 0)
    def _():
        gram_ref[...] = jnp.zeros_like(gram_ref)
        csum_ref[...] = jnp.zeros_like(csum_ref)

    x = xT_ref[...]
    # Contract over the lane axis of both operands (x @ x.T without an explicit
    # transpose materialization).
    gram_ref[...] += lax.dot_general(
        x, x, (((1,), (1,)), ((), ())), preferred_element_type=jnp.float32)
    csum_ref[...] += jnp.sum(x, axis=1, keepdims=True)


# ----------------------------------------------------------------------------
# Pass 2: fused conv-transpose matmul + BatchNorm scale/shift + ReLU
#   xT_ref    : (Cin, TM)
#   w_ref     : (KC, Cin)   weight as (kh*kw*Cout, Cin)
#   scale_ref : (KC, 1)     gamma * rsqrt(var + eps)  per (tap, Cout) row
#   shift_ref : (KC, 1)     beta - mean * scale
#   o_ref     : (KC, TM)    lane-dense output tile (single HBM write of y)
# ----------------------------------------------------------------------------
def _convt_bn_relu_kernel(xT_ref, w_ref, scale_ref, shift_ref, o_ref):
    y = jnp.dot(w_ref[...], xT_ref[...], preferred_element_type=jnp.float32)
    o_ref[...] = jnp.maximum(y * scale_ref[...] + shift_ref[...], 0.0)


def conv_transpose_layer(x_nchw, weight, bias, gamma, beta, *, eps=1e-5, tm=256):
    """Forward pass of ConvTransposeLayer (training-mode BN + ReLU, dropout p=0).

    x_nchw : (N, Cin, H, W) float32
    weight : (Cin, Cout, 2, 2)  PyTorch ConvTranspose2d weight layout
    bias   : (Cout,)            (cancels under batch-stat BN; see header)
    gamma, beta : (Cout,)       BatchNorm affine params
    returns: (N, Cout, 2H, 2W) float32
    """
    del bias  # per-channel constant cancels in training-mode BatchNorm
    N, Cin, H, W = x_nchw.shape
    Cout, kh, kw = weight.shape[1], weight.shape[2], weight.shape[3]
    assert (kh, kw) == (2, 2)
    assert tm % 128 == 0  # lane axis of every big tile; sweep 256-1024 for large M

    KC = kh * kw * Cout
    M = N * H * W
    G = pl.cdiv(M, tm)
    M_pad = G * tm

    # --- glue: NCHW -> channel-major flat (Cin, M); weights -> (KC, Cin) ---
    xT = jnp.transpose(x_nchw, (1, 0, 2, 3)).reshape(Cin, M)
    if M_pad != M:
        # zero columns contribute nothing to Gram / column sums; count uses real M
        xT = jnp.pad(xT, ((0, 0), (0, M_pad - M)))
    w_kc = jnp.transpose(weight, (2, 3, 1, 0)).reshape(KC, Cin)

    vmem = 32 * 1024 * 1024  # tiles are ~100s of KiB; safe on v5e/v6e/v7x

    # --- Pass 1: tiny reduction over x (Cin rows, not KC rows) ---------------
    gram, csum = pl.pallas_call(
        _stats_kernel,
        grid=(G,),
        in_specs=[pl.BlockSpec((Cin, tm), lambda i: (0, i))],
        out_specs=[
            pl.BlockSpec((Cin, Cin), lambda i: (0, 0)),
            pl.BlockSpec((Cin, 1), lambda i: (0, 0)),
        ],
        out_shape=(
            jax.ShapeDtypeStruct((Cin, Cin), jnp.float32),
            jax.ShapeDtypeStruct((Cin, 1), jnp.float32),
        ),
        compiler_params=pltpu.CompilerParams(
            dimension_semantics=("arbitrary",),  # grid axis is a reduction
            vmem_limit_bytes=vmem,
        ),
    )(xT)

    # --- tiny XLA glue: BN stats analytically from the input stats -----------
    sum_kc = (w_kc @ csum).reshape(KC)                 # per (tap,Cout) sum of y
    ssq_kc = jnp.sum((w_kc @ gram) * w_kc, axis=1)     # per (tap,Cout) sum of y^2
    ch_sum = sum_kc.reshape(kh * kw, Cout).sum(axis=0)
    ch_ssq = ssq_kc.reshape(kh * kw, Cout).sum(axis=0)
    count = jnp.float32(kh * kw * M)                   # = N * 2H * 2W per channel
    mean = ch_sum / count
    var = ch_ssq / count - mean * mean                 # biased var (PyTorch BN norm.)
    inv = lax.rsqrt(var + eps)
    scale_c = gamma * inv
    shift_c = beta - mean * scale_c
    scale = jnp.tile(scale_c, kh * kw).reshape(KC, 1)
    shift = jnp.tile(shift_c, kh * kw).reshape(KC, 1)

    # --- Pass 2: fused matmul + BN + ReLU, single HBM write of y -------------
    out_T = pl.pallas_call(
        _convt_bn_relu_kernel,
        grid=(G,),
        in_specs=[
            pl.BlockSpec((Cin, tm), lambda i: (0, i)),
            pl.BlockSpec((KC, Cin), lambda i: (0, 0)),
            pl.BlockSpec((KC, 1), lambda i: (0, 0)),
            pl.BlockSpec((KC, 1), lambda i: (0, 0)),
        ],
        out_specs=pl.BlockSpec((KC, tm), lambda i: (0, i)),
        out_shape=jax.ShapeDtypeStruct((KC, M_pad), jnp.float32),
        compiler_params=pltpu.CompilerParams(
            dimension_semantics=("parallel",),  # pipelining + v7x dual-TC sharding
            vmem_limit_bytes=vmem,
        ),
    )(xT, w_kc, scale, shift)

    # --- glue: single pixel-shuffle + straight-to-NCHW transpose -------------
    out_T = out_T[:, :M]
    out = out_T.reshape(kh, kw, Cout, N, H, W)
    out = jnp.transpose(out, (3, 2, 4, 0, 5, 1)).reshape(N, Cout, kh * H, kw * W)
    return out


# ----------------------------------------------------------------------------
# Pure-JAX reference (independent path via lax.conv_general_dilated) for checking
# ----------------------------------------------------------------------------
def _reference(x, weight, bias, gamma, beta, *, stride=2, padding=0, out_padding=0, eps=1e-5):
    k = weight.shape[2]
    rhs = jnp.flip(weight, (2, 3)).transpose(1, 0, 2, 3)  # (Cout, Cin, kh, kw)
    pad = k - 1 - padding
    y = lax.conv_general_dilated(
        x, rhs,
        window_strides=(1, 1),
        padding=[(pad, pad + out_padding), (pad, pad + out_padding)],
        lhs_dilation=(stride, stride),
        dimension_numbers=("NCHW", "OIHW", "NCHW"),
    ) + bias.reshape(1, -1, 1, 1)
    mean = jnp.mean(y, axis=(0, 2, 3), keepdims=True)
    var = jnp.mean(jnp.square(y - mean), axis=(0, 2, 3), keepdims=True)
    y = (y - mean) * lax.rsqrt(var + eps) * gamma.reshape(1, -1, 1, 1) + beta.reshape(1, -1, 1, 1)
    return jnp.maximum(y, 0.0)


if __name__ == "__main__":
    key = jax.random.PRNGKey(0)
    k_x, k_w, k_b = jax.random.split(key, 3)

    N, Cin, H, W = 2, 4, 16, 16
    Cout = 8

    x = jax.random.normal(k_x, (N, Cin, H, W), dtype=jnp.float32)
    # Deterministic synthetic init (shapes per nn.ConvTranspose2d(Cin, Cout, 2, 2))
    weight = 0.1 * jax.random.normal(k_w, (Cin, Cout, 2, 2), dtype=jnp.float32)
    bias = 0.05 * jax.random.normal(k_b, (Cout,), dtype=jnp.float32)
    # BatchNorm2d default affine init
    gamma = jnp.ones((Cout,), dtype=jnp.float32)
    beta = jnp.zeros((Cout,), dtype=jnp.float32)

    # tm=256 keeps this small test multi-tile (M = 512 -> grid of 2), exercising
    # the cross-tile accumulator path; use 512-1024 for large N*H*W.
    out = conv_transpose_layer(x, weight, bias, gamma, beta, tm=256)
    out = jax.block_until_ready(out)

    ref = jax.block_until_ready(_reference(x, weight, bias, gamma, beta))
    assert out.shape == (N, Cout, 2 * H, 2 * W), out.shape
    np.testing.assert_allclose(np.asarray(out), np.asarray(ref), rtol=1e-4, atol=1e-4)

    print("KERNEL_OK")
</pallas_src>

<mosaic_0001>
module attributes {stable_mosaic.version = 11 : i64} {
  func.func @_stats_kernel(%arg0: i32, %arg1: memref<4x256xf32, #tpu.memory_space<vmem>>, %arg2: memref<4x4xf32, #tpu.memory_space<vmem>>, %arg3: memref<4x1xf32, #tpu.memory_space<vmem>>) attributes {dimension_semantics = [#tpu.dimension_semantics<arbitrary>], iteration_bounds = array<i64: 2>, scalar_prefetch = 0 : i64, scratch_operands = 0 : i64, tpu.core_type = #tpu.core_type<tc>, window_params = [{transform_indices = @transform_0, window_bounds = array<i64: 4, 256>}, {pipeline_mode = #tpu.pipeline_mode<synchronous>, transform_indices = @transform_1, window_bounds = array<i64: 4, 4>}, {pipeline_mode = #tpu.pipeline_mode<synchronous>, transform_indices = @transform_2, window_bounds = array<i64: 4, 1>}]} {
    %c0_i32 = arith.constant 0 : i32
    %0 = arith.cmpi eq, %arg0, %c0_i32 : i32
    %1 = arith.extui %0 : i1 to i32
    %c0_i32_0 = arith.constant 0 : i32
    %2 = arith.cmpi ne, %1, %c0_i32_0 : i32
    scf.if %2 {
      %cst_11 = arith.constant 0.000000e+00 : f32
      %13 = vector.broadcast %cst_11 : f32 to vector<4x4xf32>
      %c0_12 = arith.constant 0 : index
      %c0_13 = arith.constant 0 : index
      %14 = vector.load %arg2[%c0_12, %c0_13] : memref<4x4xf32, #tpu.memory_space<vmem>>, vector<4x4xf32>
      tpu.vector_store %arg2[%c0_12, %c0_13], %13 {strides = array<i32>} : memref<4x4xf32, #tpu.memory_space<vmem>>, vector<4x4xf32>,
      %cst_14 = arith.constant 0.000000e+00 : f32
      %15 = vector.broadcast %cst_14 : f32 to vector<4x1xf32>
      %c0_15 = arith.constant 0 : index
      %c0_16 = arith.constant 0 : index
      %16 = vector.load %arg3[%c0_15, %c0_16] : memref<4x1xf32, #tpu.memory_space<vmem>>, vector<4x1xf32>
      tpu.vector_store %arg3[%c0_15, %c0_16], %15 {strides = array<i32>} : memref<4x1xf32, #tpu.memory_space<vmem>>, vector<4x1xf32>,
    } else {
    }
    %c0 = arith.constant 0 : index
    %c0_1 = arith.constant 0 : index
    %3 = vector.load %arg1[%c0, %c0_1] : memref<4x256xf32, #tpu.memory_space<vmem>>, vector<4x256xf32>
    %c0_2 = arith.constant 0 : index
    %c0_3 = arith.constant 0 : index
    %4 = vector.load %arg2[%c0_2, %c0_3] : memref<4x4xf32, #tpu.memory_space<vmem>>, vector<4x4xf32>
    %cst = arith.constant dense<0.000000e+00> : vector<4x4xf32>
    %5 = tpu.matmul %3, %3, %cst {dimension_numbers = #tpu.dot_dimension_numbers<[1], [1], [0], [0], [0, 0, 1, 0], [], []>} : vector<4x256xf32>, vector<4x256xf32>, vector<4x4xf32> -> vector<4x4xf32>
    %6 = arith.addf %4, %5 : vector<4x4xf32>
    %c0_4 = arith.constant 0 : index
    %c0_5 = arith.constant 0 : index
    %7 = vector.load %arg2[%c0_4, %c0_5] : memref<4x4xf32, #tpu.memory_space<vmem>>, vector<4x4xf32>
    tpu.vector_store %arg2[%c0_4, %c0_5], %6 {strides = array<i32>} : memref<4x4xf32, #tpu.memory_space<vmem>>, vector<4x4xf32>,
    %c0_6 = arith.constant 0 : index
    %c0_7 = arith.constant 0 : index
    %8 = vector.load %arg3[%c0_6, %c0_7] : memref<4x1xf32, #tpu.memory_space<vmem>>, vector<4x1xf32>
    %cst_8 = arith.constant dense<0.000000e+00> : vector<4xf32>
    %9 = vector.multi_reduction <add>, %3, %cst_8 [1] : vector<4x256xf32> to vector<4xf32>
    %10 = vector.shape_cast %9 : vector<4xf32> to vector<4x1xf32>
    %11 = arith.addf %8, %10 : vector<4x1xf32>
    %c0_9 = arith.constant 0 : index
    %c0_10 = arith.constant 0 : index
    %12 = vector.load %arg3[%c0_9, %c0_10] : memref<4x1xf32, #tpu.memory_space<vmem>>, vector<4x1xf32>
    tpu.vector_store %arg3[%c0_9, %c0_10], %11 {strides = array<i32>} : memref<4x1xf32, #tpu.memory_space<vmem>>, vector<4x1xf32>,
    return
  }
  func.func @transform_0(%arg0: i32) -> (i32, i32) {
    %c0_i32 = arith.constant 0 : i32
    %c0_i32_0 = arith.constant 0 : i32
    return %c0_i32, %arg0 : i32, i32
  }
  func.func @transform_1(%arg0: i32) -> (i32, i32) {
    %c0_i32 = arith.constant 0 : i32
    %c0_i32_0 = arith.constant 0 : i32
    %c0_i32_1 = arith.constant 0 : i32
    return %c0_i32, %c0_i32_0 : i32, i32
  }
  func.func @transform_2(%arg0: i32) -> (i32, i32) {
    %c0_i32 = arith.constant 0 : i32
    %c0_i32_0 = arith.constant 0 : i32
    %c0_i32_1 = arith.constant 0 : i32
    return %c0_i32, %c0_i32_0 : i32, i32
  }
}

</mosaic_0001>

<llo_original>
// kernel: tpu_custom_call.1
$region0: #{tpu_custom_call.1}
  #allocation0 [shape = 'u32[]', space=smem, size = 0x4, offset = 0x4, fixed_abs, tag = 'smem constant byte address 0x4 - core index']
  #allocation1 [shape = 'u32[144,128]{1,0:T(1,128)}', space=vmem, size = 0x12000, scoped, tag = 'internal scratch']
  %s0 = inlined_call_operand.hbm [shape: f32[4,512], index: 0, kind: input, shape index: {}]
  %s1 = inlined_call_operand.hbm [shape: f32[4,4], index: 1, kind: output, shape index: {0}]
  %s2 = inlined_call_operand.vmem [shape: f32[4,1], index: 2, kind: output, shape index: {1}]
  %3 = xla_tuple %s1, %s2
  %s4 = sld [smem:[#allocation0]]
  $region53: #{tpu_custom_call.1} parent=0
    _
  %s6 = ssub.s32 1, %s4
  %s7 = scalar_select 0, %s6, %s4
  $region1: #{tpu_custom_call.1} parent=0
    #allocation2 [shape = 'u8[8192]{0}', space=vmem, size = 0x2000, scoped, tag = 'input window, operand 0']
    #allocation3 [shape = 's32[2]{0}', space=sflag, size = 0x8, scoped, tag = 'scoped memory for tpu_custom_call.1']
    #allocation4 [shape = 's32[2]{0}', space=sflag, size = 0x8, scoped, tag = 'scoped memory for tpu_custom_call.1']
    #allocation5 [shape = 'u8[2048]{0}', space=vmem, size = 0x800, scoped, tag = 'output window, operand 0, single buffered']
    %8 = vsyncpa [#allocation3], 0
    %s9 = scalar_lea.sflag [#allocation3], 1
    %10 = vsyncpa %s9, 0
    %11 = vsyncpa [#allocation4], 0
    loop: start=0, step=1, limit=4
    $region2: #{tpu_custom_call.1} parent=1 // loop_pre_header
      _
    $region3: #{tpu_custom_call.1} parent=1 // loop_header
      %s13 = sphi 0, %s17
      %p14 = scmp.ge.s32.totalorder %s13, 4
      %s23 = sphi 0, %s25
      %s26 = sphi 0, %s23
      %s27 = sphi 0, %s26
      %s43 = sphi 0, %s27
      %s47 = sphi 0, %s47
      %s49 = sphi 0, %s47
      %s50 = sphi 0, %s49
      %s64 = sphi 0, %s50
      %s68 = sphi 0, %s68
      %s70 = sphi 0, %s68
      %s71 = sphi 0, %s70
      %s85 = sphi 0, %s71
    $region4: #{tpu_custom_call.1} parent=1 // loop_header_branch
      %16 = sbr.rel (%p14) target = $region8
    $region5: #{tpu_custom_call.1} parent=1 // loop_body
      %s18 = ssub.s32 %s13, 1
      %s19 = ssub.s32 %s13, 2
      %s20 = sadd.s32 %s13, 1
      %s21 = ssub.s32 %s13, %s20
      %p22 = scmp.eq.s32.totalorder %s21, 0
      %s24 = sadd.s32 %s23, 1
      %s25 = scalar_select %p22, %s23, %s24
      %p28 = pneg %p22
      %p29 = scmp.eq.s32.totalorder %s13, 1
      %p30 = por %p28, %p29
      %p31 = scmp.ne.s32.totalorder %s23, %s26
      %p32 = scmp.eq.s32.totalorder %s13, 0
      %p33 = por %p31, %p32
      %p34 = scmp.ne.s32.totalorder %s23, %s26
      %p35 = scmp.eq.s32.totalorder %s18, 1
      %p36 = por %p34, %p35
      %p37 = scmp.ne.s32.totalorder %s26, %s27
      %p38 = scmp.eq.s32.totalorder %s18, 0
      %p39 = por %p37, %p38
      %p40 = scmp.ne.s32.totalorder %s26, %s27
      %p41 = scmp.eq.s32.totalorder %s19, 1
      %p42 = por %p40, %p41
      %p44 = scmp.ne.s32.totalorder %s27, %s43
      %p45 = scmp.eq.s32.totalorder %s19, 0
      %p46 = por %p44, %p45
      %s48 = sadd.s32 %s47, 1
      %p51 = scmp.eq.s32.totalorder %s13, 1
      %p52 = scmp.ne.s32.totalorder %s47, %s49
      %p53 = scmp.eq.s32.totalorder %s13, 0
      %p54 = por %p52, %p53
      %p55 = scmp.ne.s32.totalorder %s47, %s49
      %p56 = scmp.eq.s32.totalorder %s18, 1
      %p57 = por %p55, %p56
      %p58 = scmp.ne.s32.totalorder %s49, %s50
      %p59 = scmp.eq.s32.totalorder %s18, 0
      %p60 = por %p58, %p59
      %p61 = scmp.ne.s32.totalorder %s49, %s50
      %p62 = scmp.eq.s32.totalorder %s19, 1
      %p63 = por %p61, %p62
      %p65 = scmp.ne.s32.totalorder %s50, %s64
      %p66 = scmp.eq.s32.totalorder %s19, 0
      %p67 = por %p65, %p66
      %s69 = sadd.s32 %s68, 1
      %p72 = scmp.eq.s32.totalorder %s13, 1
      %p73 = scmp.ne.s32.totalorder %s68, %s70
      %p74 = scmp.eq.s32.totalorder %s13, 0
      %p75 = por %p73, %p74
      %p76 = scmp.ne.s32.totalorder %s68, %s70
      %p77 = scmp.eq.s32.totalorder %s18, 1
      %p78 = por %p76, %p77
      %p79 = scmp.ne.s32.totalorder %s70, %s71
      %p80 = scmp.eq.s32.totalorder %s18, 0
      %p81 = por %p79, %p80
      %p82 = scmp.ne.s32.totalorder %s70, %s71
      %p83 = scmp.eq.s32.totalorder %s19, 1
      %p84 = por %p82, %p83
      %p86 = scmp.ne.s32.totalorder %s71, %s85
      %p87 = scmp.eq.s32.totalorder %s19, 0
      %p88 = por %p86, %p87
      %p89 = scmp.le.s32.totalorder 1, %s13
      %p90 = scmp.lt.s32.totalorder %s13, 3
      %p91 = pnand %p89, %p90
      %p92 = pneg %p91
      // Predicated region
      $region9: #{tpu_custom_call.1} parent=5 // pred_check
        _
      $region10: #{tpu_custom_call.1} parent=5 // pred_check_branch
        %94 = sbr.rel (%p91) target = $region12
      $region11: #{tpu_custom_call.1} parent=5 // pred_region
        %s95 = ssub.s32 %s13, 1
      $region12: #{tpu_custom_call.1} parent=5 // pred_fallthru
        _
      %p96 = scmp.lt.s32.totalorder %s13, 2
      // Predicated region
      $region13: #{tpu_custom_call.1} parent=5 // pred_check
        %p97 = pneg %p96
      $region14: #{tpu_custom_call.1} parent=5 // pred_check_branch
        %99 = sbr.rel (%p97) target = $region16
      $region15: #{tpu_custom_call.1} parent=5 // pred_region
        // Predicated region
        $region17: #{tpu_custom_call.1} parent=15 // pred_check
          %p100 = pneg %p33
        $region18: #{tpu_custom_call.1} parent=15 // pred_check_branch
          %102 = sbr.rel (%p100) target = $region20
        $region19: #{tpu_custom_call.1} parent=15 // pred_region
          %s103 = sand.u32 %s23, 1
          %s104 = scalar_lea.sflag [#allocation3], %s103
          %s105 = sand.u32 %s23, 1
          %s106 = smul.addr %s105, 8
          %s107 = scalar_lea.vmem [#allocation2], %s106
          %s108 = smul.u32 2, %s13
          %s110 = ssub.s32 128, 128
          %111 = vsyncadd %s104, %s110
          %s112 = smul.addr %s108, 64
          %s113 = scalar_lea.hbm %s0, %s112
          %s115 = sshll.u32 %s107, 4
          %s116 = int_to_ptr.vmem [resolvable:$true] %s115
          %118 = dma.hbm_to_vmem [thread:$0]  %s113, 128, %s116, %s104
        $region20: #{tpu_custom_call.1} parent=15 // pred_fallthru
          _
      $region16: #{tpu_custom_call.1} parent=5 // pred_fallthru
        _
      %p119 = scmp.le.s32.totalorder 1, %s13
      %p120 = scmp.lt.s32.totalorder %s13, 3
      %p121 = pnand %p119, %p120
      %p122 = pneg %p121
      // Predicated region
      $region21: #{tpu_custom_call.1} parent=5 // pred_check
        _
      $region22: #{tpu_custom_call.1} parent=5 // pred_check_branch
        %124 = sbr.rel (%p121) target = $region24
      $region23: #{tpu_custom_call.1} parent=5 // pred_region
        %s125 = ssub.s32 %s13, 1
        %s126 = sand.u32 %s26, 1
        %s127 = scalar_lea.sflag [#allocation3], %s126
        %s128 = sand.u32 %s26, 1
        %s129 = smul.addr %s128, 8
        %s130 = scalar_lea.vmem [#allocation2], %s129
        // Predicated region
        $region25: #{tpu_custom_call.1} parent=23 // pred_check
          %p131 = pneg %p39
        $region26: #{tpu_custom_call.1} parent=23 // pred_check_branch
          %133 = sbr.rel (%p131) target = $region28
        $region27: #{tpu_custom_call.1} parent=23 // pred_region
          %134 = dma.done %s127, 128
        $region28: #{tpu_custom_call.1} parent=23 // pred_fallthru
          _
        %s135 = sand.u32 %s26, 1
        %s136 = scalar_lea.sflag [#allocation3], %s135
        %s137 = sand.u32 %s26, 1
        %s138 = smul.addr %s137, 8
        %s139 = scalar_lea.vmem [#allocation2], %s138
        %p140 = pneg %p39
        %p141 = pneg %p36
        %p142 = pneg %p60
        %p143 = pneg %p57
        %p144 = pneg %p81
        %p145 = pneg %p78
        %s146 = smul.u32 2, %s18
        %p147 = scmp.eq.s32.totalorder %s18, 0
        // Predicated region
        $region29: #{tpu_custom_call.1} parent=23 // pred_check
          %p148 = pneg %p147
        $region30: #{tpu_custom_call.1} parent=23 // pred_check_branch
          %150 = sbr.rel (%p148) target = $region32
        $region31: #{tpu_custom_call.1} parent=23 // pred_region
          %vm151 = vcmask 27648
          %152 = vst.msk [vmem:[#allocation5] sm:$0xf] %vm151, 0.0
          %vm153 = vcmask 3072
          %154 = vst.msk [vmem:[%s2] sm:$0xf] %vm153, 0.0
        $region32: #{tpu_custom_call.1} parent=23 // pred_fallthru
          _
        %v155 = vld [vmem:[%s130] sm:$0xff]
        %v156 = vld [vmem:[#allocation5] sm:$0xf]
        %v158 = vcombine.high %v155, %v155
        %160 = vmatprep.subr.mxu0 0.0
        %161 = vmatpush1.xpose.msra.mxu0 0.0
        %162 = vmatprep.subr.mxu0 0.0
        %163 = vmatpush1.xpose.msra.mxu0 0.0
        %164 = vmatprep.subr.mxu0 0.0
        %165 = vmatpush1.xpose.msra.mxu0 0.0
        %166 = vmatprep.subr.mxu0 0.0
        %167 = vmatpush1.xpose.msra.mxu0 0.0
        %168 = vmatprep.subr.mxu0 0.0
        %169 = vmatpush1.xpose.msra.mxu0 0.0
        %170 = vmatprep.subr.mxu0 0.0
        %171 = vmatpush1.xpose.msra.mxu0 0.0
        %172 = vmatprep.subr.mxu0 0.0
        %173 = vmatpush1.xpose.msra.mxu0 0.0
        %174 = vmatprep.subr.mxu0 0.0
        %175 = vmatpush1.xpose.msra.mxu0 0.0
        %176 = vmatprep.subr.mxu0 0.0
        %177 = vmatpush1.xpose.msra.mxu0 0.0
        %178 = vmatprep.subr.mxu0 0.0
        %179 = vmatpush1.xpose.msra.mxu0 0.0
        %180 = vmatprep.subr.mxu0 0.0
        %181 = vmatpush1.xpose.msra.mxu0 0.0
        %182 = vmatprep.subr.mxu0 0.0
        %183 = vmatpush1.xpose.msra.mxu0 0.0
        %184 = vmatprep.subr.mxu0 0.0
        %185 = vmatpush1.xpose.msra.mxu0 0.0
        %186 = vmatprep.subr.mxu0 0.0
        %187 = vmatpush1.xpose.msra.mxu0 0.0
        %188 = vmatprep.subr.mxu0 0.0
        %189 = vmatpush1.xpose.msra.mxu0 0.0
        %190 = vmatprep.subr.mxu0 %v158
        %191 = vmatpush1.xpose.msra.mxu0 %v155
        %192 = vmatprep.subr.mxu0 0.0
        %193 = vmatpush2.xpose.msra.mxu0 0.0
        %194 = vmatprep.subr.mxu0 0.0
        %195 = vmatpush2.xpose.msra.mxu0 0.0
        %196 = vmatprep.subr.mxu0 0.0
        %197 = vmatpush2.xpose.msra.mxu0 0.0
        %198 = vmatprep.subr.mxu0 0.0
        %199 = vmatpush2.xpose.msra.mxu0 0.0
        %200 = vmatprep.subr.mxu0 0.0
        %201 = vmatpush2.xpose.msra.mxu0 0.0
        %202 = vmatprep.subr.mxu0 0.0
        %203 = vmatpush2.xpose.msra.mxu0 0.0
        %204 = vmatprep.subr.mxu0 0.0
        %205 = vmatpush2.xpose.msra.mxu0 0.0
        %206 = vmatprep.subr.mxu0 0.0
        %207 = vmatpush2.xpose.msra.mxu0 0.0
        %208 = vmatprep.subr.mxu0 0.0
        %209 = vmatpush2.xpose.msra.mxu0 0.0
        %210 = vmatprep.subr.mxu0 0.0
        %211 = vmatpush2.xpose.msra.mxu0 0.0
        %212 = vmatprep.subr.mxu0 0.0
        %213 = vmatpush2.xpose.msra.mxu0 0.0
        %214 = vmatprep.subr.mxu0 0.0
        %215 = vmatpush2.xpose.msra.mxu0 0.0
        %216 = vmatprep.subr.mxu0 0.0
        %217 = vmatpush2.xpose.msra.mxu0 0.0
        %218 = vmatprep.subr.mxu0 0.0
        %219 = vmatpush2.xpose.msra.mxu0 0.0
        %220 = vmatprep.subr.mxu0 0.0
        %221 = vmatpush2.xpose.msra.mxu0 0.0
        %222 = vmatprep.subr.mxu0 0.0
        %223 = vmatpush2.xpose.msra.mxu0 0.0
        %224 = vmatprep.mubr.f32.mxu0 %v158
        %225 = vmatmul.mubr.f32.gmra.mxu0 %v155
        %v226 = vpop.f32.mrf.mxu0
        %v227 = vadd.f32 0.0, %v226
        %v228 = vpop.f32.mrf.mxu0
        %229 = vdwg.mxu0
        %v230 = vadd.f32 %v156, %v227
        %vm231 = vcmask 27648
        %232 = vst.msk [vmem:[#allocation5] sm:$0xf] %vm231, %v230
        %v233 = vld [vmem:[%s2] sm:$0xf]
        %vm234 = vcmask 1043456
        %v235 = vsel %vm234, %v155, 0.0
        %v236 = vsel %vm234, %v158, 0.0
        %v237 = vadd.f32 %v235, %v236
        %238 = vadd.xlane.f32.xlu0 %v237
        %v239 = vpop.xlane.xlu0 %238
        %v240 = vadd.f32 %v233, %v239
        %vm241 = vcmask 3072
        %242 = vst.msk [vmem:[%s2] sm:$0xf] %vm241, %v240
        // Predicated region
        $region33: #{tpu_custom_call.1} parent=23 // pred_check
          %p243 = pneg %p57
        $region34: #{tpu_custom_call.1} parent=23 // pred_check_branch
          %245 = sbr.rel (%p243) target = $region36
        $region35: #{tpu_custom_call.1} parent=23 // pred_region
          %s247 = ssub.s32 64, 64
          %248 = vsyncadd [#allocation4], %s247
          %s250 = sshll.u32 [#allocation5], 4
          %s251 = int_to_ptr.vmem [resolvable:$true] %s250
          %253 = dma.vmem_to_hbm [thread:$0]  %s251, 64, %s1, [#allocation4]
        $region36: #{tpu_custom_call.1} parent=23 // pred_fallthru
          _
        // Predicated region
        $region37: #{tpu_custom_call.1} parent=23 // pred_check
          %p254 = pneg %p78
        $region38: #{tpu_custom_call.1} parent=23 // pred_check_branch
          %256 = sbr.rel (%p254) target = $region40
        $region39: #{tpu_custom_call.1} parent=23 // pred_region
          _
        $region40: #{tpu_custom_call.1} parent=23 // pred_fallthru
          _
        // Predicated region
        $region41: #{tpu_custom_call.1} parent=23 // pred_check
          %p257 = pneg %p57
        $region42: #{tpu_custom_call.1} parent=23 // pred_check_branch
          %259 = sbr.rel (%p257) target = $region44
        $region43: #{tpu_custom_call.1} parent=23 // pred_region
          %260 = dma.done [#allocation4], 64
        $region44: #{tpu_custom_call.1} parent=23 // pred_fallthru
          _
        // Predicated region
        $region45: #{tpu_custom_call.1} parent=23 // pred_check
          %p261 = pneg %p78
        $region46: #{tpu_custom_call.1} parent=23 // pred_check_branch
          %263 = sbr.rel (%p261) target = $region48
        $region47: #{tpu_custom_call.1} parent=23 // pred_region
          _
        $region48: #{tpu_custom_call.1} parent=23 // pred_fallthru
          _
      $region24: #{tpu_custom_call.1} parent=5 // pred_fallthru
        _
      %p264 = scmp.le.s32.totalorder 2, %s13
      // Predicated region
      $region49: #{tpu_custom_call.1} parent=5 // pred_check
        %p265 = pneg %p264
      $region50: #{tpu_custom_call.1} parent=5 // pred_check_branch
        %267 = sbr.rel (%p265) target = $region52
      $region51: #{tpu_custom_call.1} parent=5 // pred_region
        %s268 = ssub.s32 %s13, 2
      $region52: #{tpu_custom_call.1} parent=5 // pred_fallthru
        _
    $region6: #{tpu_custom_call.1} parent=1 // loop_footer
      %s17 = sadd.s32 1, %s13
    $region7: #{tpu_custom_call.1} parent=1 // loop_footer_branch
      %12 = sbr.rel target = $region3
    $region8: #{tpu_custom_call.1} parent=1 // loop_exit
      _
    %269 = vsyncpa [#allocation3], 1
    %s270 = scalar_lea.sflag [#allocation3], 1
    %271 = vsyncpa %s270, 1
    %272 = vsyncpa [#allocation4], 1
    %s273 = scalar_lea.sflag [#allocation4], 1
    %274 = vsyncpa %s273, 1

</llo_original>
